<compile_context>
chip_gen: v6e
topology: v6e:2x2x1
jax: 0.10.0
libtpu: 0.0.40
codegen_flags: <defaults>
</compile_context>

<pallas_src>
import functools
import math

import jax
import jax.numpy as jnp
from jax import lax
from jax.experimental import pallas as pl
from jax.experimental.pallas import tpu as pltpu


def _round_up(x, m):
    return ((x + m - 1) // m) * m


def _pick_batch_tile(b):
    """Batch tile: large (128/256) for MXU efficiency when the batch allows,
    and always >= 2 grid steps so v7x's second TensorCore has work."""
    b8 = _round_up(max(b, 1), 8)
    if b8 >= 512:
        tb = 256                       # v6e/v7x sweet spot
    elif b8 >= 256:
        tb = 128                       # still a full MXU height on v5e
    else:
        tb = max(8, _round_up((b8 + 1) // 2, 8))   # split small batches in two
    b_pad = _round_up(b, tb)
    if b_pad // tb < 2:
        b_pad += tb                    # force >= 2 parallel grid steps (v7x)
    return tb, b_pad


def mp_kernel(x_ref, wc_ref, wu_ref, res_ref, xhat_ref, *,
              k, a_real, a_pad, use_bf16):
    """k matching-pursuit steps on a (TB, 2*N_pad) packed [re | im] batch tile."""
    wc = wc_ref[...]                    # (2*N_pad, 2*A_pad)  corr weights
    wu = wu_ref[...]                    # (2*A_pad, 2*N_pad)  update weights
    two_a = 2 * a_pad

    # Small (1, A) / (1, 2A) constants; everything per-row stays (TB, 1) so the
    # loop does not carry (TB, 2A) integer tiles (keeps vreg pressure low).
    atom_half = lax.broadcasted_iota(jnp.int32, (1, a_pad), 1)       # atom ids
    valid_half = atom_half < a_real                                   # real atoms
    col_full = lax.broadcasted_iota(jnp.int32, (1, two_a), 1)
    atom_full = col_full - jnp.where(col_full >= a_pad,
                                     jnp.int32(a_pad), jnp.int32(0))

    def body(_, r):
        lhs = r.astype(jnp.bfloat16) if use_bf16 else r
        # corr = residual @ conj(W), packed [corr_re | corr_im]: one MXU matmul.
        corr = jnp.dot(lhs, wc, preferred_element_type=jnp.float32)  # (TB, 2A)
        # |corr|^2 on the first A_pad lanes only (A_pad multiple of 128 -> the
        # two half slices are lane-tile aligned; second half is a duplicate).
        cr = corr[:, :a_pad]
        ci = corr[:, a_pad:]
        abs2 = jnp.where(valid_half, cr * cr + ci * ci, -1.0)        # (TB, A)
        # keep_k_max(k=1): exact argmax via two cross-lane reductions (XLU).
        mx = jnp.max(abs2, axis=1, keepdims=True)                    # (TB, 1)
        inv_sel = jnp.where(abs2 == mx,
                            jnp.int32(a_pad - 1) - atom_half, jnp.int32(-1))
        best = jnp.int32(a_pad - 1) - jnp.max(inv_sel, axis=1, keepdims=True)
        z = jnp.where(atom_full == best, corr, 0.0)   # keeps re+im of chosen atom
        zc = z.astype(jnp.bfloat16) if use_bf16 else z
        # residual = residual - z @ W.T, packed: one MXU matmul.
        return r - jnp.dot(zc, wu, preferred_element_type=jnp.float32)

    # Steps are serially dependent -> cap the unroll instead of fully unrolling.
    r = lax.fori_loop(0, k, body, x_ref[...], unroll=min(int(k), 4))
    res_ref[...] = r
    xhat_ref[...] = x_ref[...] - r      # re-read x; x not live across the loop


def mpnet_forward_pallas(x_re, x_im, w_re, w_im, k, use_bf16=False):
    """Runs k matching-pursuit iterations (sigma=None branch).
    Returns (res_re, res_im, xhat_re, xhat_im)."""
    f32 = jnp.float32
    x_re = x_re.astype(f32)
    x_im = x_im.astype(f32)
    w_re = w_re.astype(f32)
    w_im = w_im.astype(f32)

    B, N = x_re.shape
    A = w_re.shape[1]

    TB, B_pad = _pick_batch_tile(B)
    N_pad = _round_up(N, 64)            # packed last dim 2*N_pad multiple of 128
    A_pad = _round_up(A, 128)           # A_pad itself lane-aligned -> cheap halves
    two_n, two_a = 2 * N_pad, 2 * A_pad

    # --- pack inputs: [re | im] with zero padding (padded rows/cols stay 0) ---
    xr = jnp.zeros((B_pad, N_pad), f32).at[:B, :N].set(x_re)
    xi = jnp.zeros((B_pad, N_pad), f32).at[:B, :N].set(x_im)
    x_packed = jnp.concatenate([xr, xi], axis=1)              # (B_pad, 2*N_pad)

    wdt = jnp.bfloat16 if use_bf16 else f32
    wr = jnp.zeros((N_pad, A_pad), f32).at[:N, :A].set(w_re)
    wi = jnp.zeros((N_pad, A_pad), f32).at[:N, :A].set(w_im)
    # corr = R @ W_corr  with  W_corr = [[w_re, -w_im],[w_im, w_re]]
    w_corr = jnp.concatenate(
        [jnp.concatenate([wr, -wi], axis=1),
         jnp.concatenate([wi, wr], axis=1)], axis=0).astype(wdt)   # (2N, 2A)
    # upd = Z @ W_upd   with  W_upd = W_corr.T (built once in the wrapper).
    w_upd = jnp.transpose(w_corr)                                  # (2A, 2N)

    grid = (B_pad // TB,)
    kernel = functools.partial(mp_kernel, k=int(k), a_real=A, a_pad=A_pad,
                               use_bf16=bool(use_bf16))

    # Generation-aware VMEM budget (v7x: 64 MiB physical, v5e/v6e: 128 MiB).
    wbytes = 2 if use_bf16 else 4
    need = (2 * two_n * two_a * wbytes * 2        # both weights, double-buffered
            + 3 * TB * two_n * 4 * 2              # x / res / xhat tiles
            + (4 << 20))                          # headroom
    try:
        cap = int(pltpu.get_tpu_info().vmem_capacity_bytes)
    except Exception:
        cap = 64 << 20
    vmem_limit = int(min(max(need, 32 << 20), (cap * 3) // 4))

    flops = 4 * int(k) * B_pad * two_n * two_a            # two matmuls per step
    bytes_accessed = 4 * 3 * B_pad * two_n + 2 * two_n * two_a * wbytes

    res_p, xhat_p = pl.pallas_call(
        kernel,
        out_shape=(jax.ShapeDtypeStruct((B_pad, two_n), f32),
                   jax.ShapeDtypeStruct((B_pad, two_n), f32)),
        grid_spec=pltpu.PrefetchScalarGridSpec(
            num_scalar_prefetch=0,
            grid=grid,
            in_specs=[
                pl.BlockSpec((TB, two_n), lambda b: (b, 0)),       # packed x tile
                pl.BlockSpec((two_n, two_a), lambda b: (0, 0)),    # W_corr (resident)
                pl.BlockSpec((two_a, two_n), lambda b: (0, 0)),    # W_upd  (resident)
            ],
            out_specs=[
                pl.BlockSpec((TB, two_n), lambda b: (b, 0)),       # residual
                pl.BlockSpec((TB, two_n), lambda b: (b, 0)),       # x_hat
            ],
        ),
        compiler_params=pltpu.CompilerParams(
            dimension_semantics=("parallel",),          # batch axis -> both TCs on v7x
            vmem_limit_bytes=vmem_limit,
        ),
        cost_estimate=pl.CostEstimate(
            flops=flops, transcendentals=0, bytes_accessed=bytes_accessed),
    )(x_packed, w_corr, w_upd)

    res_re = res_p[:B, :N]
    res_im = res_p[:B, N_pad:N_pad + N]
    xhat_re = xhat_p[:B, :N]
    xhat_im = xhat_p[:B, N_pad:N_pad + N]
    return res_re, res_im, xhat_re, xhat_im


def build_steering_dictionary(ant_position, doa, g_vec, lambda_, normalize=True):
    """Constrained steering dictionary W (N, A), split into (re, im).

    W[n, a] = g_vec[n] * exp(-i * 2*pi/lambda * <ant_position[n], d(DoA[a])>)
    with d(theta) = [cos theta, sin theta]; optionally column-normalized.
    (Parameter setup / glue — plain JAX, not in the kernel.)
    """
    d = jnp.stack([jnp.cos(doa), jnp.sin(doa)], axis=1)           # (A, 2)
    phase = (2.0 * math.pi / lambda_) * (ant_position @ d.T)      # (N, A)
    w_re = g_vec[:, None] * jnp.cos(phase)
    w_im = -g_vec[:, None] * jnp.sin(phase)
    if normalize:
        # NOTE: no epsilon, matching the torch reference (zero-gain columns -> NaN).
        col_norm = jnp.sqrt(jnp.sum(w_re * w_re + w_im * w_im, axis=0, keepdims=True))
        w_re = w_re / col_norm
        w_im = w_im / col_norm
    return w_re.astype(jnp.float32), w_im.astype(jnp.float32)


if __name__ == "__main__":
    key = jax.random.PRNGKey(0)
    B, N, A, K = 2, 16, 64, 4          # n_samples, antennas, DoA atoms, MP steps
    lambda_ = 0.5

    # Deterministic "parameters" (module __init__: ant_position, DoA, g_vec)
    k_ant, k_x1, k_x2 = jax.random.split(key, 3)
    ant_position = (jax.random.normal(k_ant, (N, 2), dtype=jnp.float32)
                    * (lambda_ / 2.0))                            # (N, 2) positions
    doa = jnp.linspace(-math.pi / 2, math.pi / 2, A, dtype=jnp.float32)  # (A,)
    g_vec = jnp.ones((N,), dtype=jnp.float32)                     # antenna gains

    w_re, w_im = build_steering_dictionary(ant_position, doa, g_vec, lambda_,
                                           normalize=True)

    # Complex input channel x (B, N), stored as re/im float32
    x_re = jax.random.normal(k_x1, (B, N), dtype=jnp.float32)
    x_im = jax.random.normal(k_x2, (B, N), dtype=jnp.float32)

    res_re, res_im, xhat_re, xhat_im = jax.jit(
        mpnet_forward_pallas, static_argnums=(4, 5))(
            x_re, x_im, w_re, w_im, K, False)
    jax.block_until_ready((res_re, res_im, xhat_re, xhat_im))
    print("KERNEL_OK")
</pallas_src>

<mosaic_0001>
module attributes {stable_mosaic.version = 11 : i64} {
  func.func @mp_kernel(%arg0: i32, %arg1: memref<8x128xf32, #tpu.memory_space<vmem>>, %arg2: memref<128x256xf32, #tpu.memory_space<vmem>>, %arg3: memref<256x128xf32, #tpu.memory_space<vmem>>, %arg4: memref<8x128xf32, #tpu.memory_space<vmem>>, %arg5: memref<8x128xf32, #tpu.memory_space<vmem>>) attributes {dimension_semantics = [#tpu.dimension_semantics<parallel>], iteration_bounds = array<i64: 2>, scalar_prefetch = 0 : i64, scratch_operands = 0 : i64, tpu.core_type = #tpu.core_type<tc>, window_params = [{transform_indices = @transform_0, window_bounds = array<i64: 8, 128>}, {pipeline_mode = #tpu.pipeline_mode<synchronous>, transform_indices = @transform_1, window_bounds = array<i64: 128, 256>}, {pipeline_mode = #tpu.pipeline_mode<synchronous>, transform_indices = @transform_2, window_bounds = array<i64: 256, 128>}, {transform_indices = @transform_3, window_bounds = array<i64: 8, 128>}, {transform_indices = @transform_4, window_bounds = array<i64: 8, 128>}]} {
    %c0 = arith.constant 0 : index
    %c0_0 = arith.constant 0 : index
    %0 = vector.load %arg2[%c0, %c0_0] : memref<128x256xf32, #tpu.memory_space<vmem>>, vector<128x256xf32>
    %c0_1 = arith.constant 0 : index
    %c0_2 = arith.constant 0 : index
    %1 = vector.load %arg3[%c0_1, %c0_2] : memref<256x128xf32, #tpu.memory_space<vmem>>, vector<256x128xf32>
    %2 = tpu.iota {dimensions = array<i32: 1>} : vector<1x128xi32>
    %c64_i32 = arith.constant 64 : i32
    %3 = vector.broadcast %c64_i32 : i32 to vector<1x128xi32>
    %4 = arith.cmpi slt, %2, %3 : vector<1x128xi32>
    %5 = tpu.iota {dimensions = array<i32: 1>} : vector<1x256xi32>
    %c128_i32 = arith.constant 128 : i32
    %6 = vector.broadcast %c128_i32 : i32 to vector<1x256xi32>
    %7 = arith.cmpi sge, %5, %6 : vector<1x256xi32>
    %c128_i32_3 = arith.constant 128 : i32
    %c0_i32 = arith.constant 0 : i32
    %8 = vector.broadcast %c128_i32_3 : i32 to vector<1x256xi32>
    %9 = vector.broadcast %c0_i32 : i32 to vector<1x256xi32>
    %10 = arith.select %7, %8, %9 : vector<1x256xi1>, vector<1x256xi32>
    %11 = arith.subi %5, %10 : vector<1x256xi32>
    %c0_4 = arith.constant 0 : index
    %c0_5 = arith.constant 0 : index
    %12 = vector.load %arg1[%c0_4, %c0_5] : memref<8x128xf32, #tpu.memory_space<vmem>>, vector<8x128xf32>
    %c0_i32_6 = arith.constant 0 : i32
    %cst = arith.constant dense<0.000000e+00> : vector<8x256xf32>
    %13 = tpu.matmul %12, %0, %cst {dimension_numbers = #tpu.dot_dimension_numbers<[1], [0], [0], [1], [0, 0, 1, 1], [], []>} : vector<8x128xf32>, vector<128x256xf32>, vector<8x256xf32> -> vector<8x256xf32>
    %14 = vector.extract_strided_slice %13 {offsets = [0, 0], sizes = [8, 128], strides = [1, 1]} : vector<8x256xf32> to vector<8x128xf32>
    %15 = vector.extract_strided_slice %13 {offsets = [0, 128], sizes = [8, 128], strides = [1, 1]} : vector<8x256xf32> to vector<8x128xf32>
    %16 = arith.mulf %14, %14 : vector<8x128xf32>
    %17 = arith.mulf %15, %15 : vector<8x128xf32>
    %18 = arith.addf %16, %17 : vector<8x128xf32>
    %cst_7 = arith.constant -1.000000e+00 : f32
    %19 = vector.shape_cast %4 : vector<1x128xi1> to vector<1x128xi1>
    %20 = vector.broadcast %19 : vector<1x128xi1> to vector<8x128xi1>
    %21 = vector.broadcast %cst_7 : f32 to vector<8x128xf32>
    %22 = arith.select %20, %18, %21 : vector<8x128xi1>, vector<8x128xf32>
    %cst_8 = arith.constant dense<0xFF800000> : vector<8xf32>
    %23 = vector.multi_reduction <maximumf>, %22, %cst_8 [1] : vector<8x128xf32> to vector<8xf32>
    %24 = vector.shape_cast %23 : vector<8xf32> to vector<8x1xf32>
    %25 = vector.broadcast %24 : vector<8x1xf32> to vector<8x128xf32>
    %26 = arith.cmpf oeq, %22, %25 : vector<8x128xf32>
    %c127_i32 = arith.constant 127 : i32
    %27 = vector.broadcast %c127_i32 : i32 to vector<1x128xi32>
    %28 = arith.subi %27, %2 : vector<1x128xi32>
    %c-1_i32 = arith.constant -1 : i32
    %29 = vector.shape_cast %28 : vector<1x128xi32> to vector<1x128xi32>
    %30 = vector.broadcast %29 : vector<1x128xi32> to vector<8x128xi32>
    %31 = vector.broadcast %c-1_i32 : i32 to vector<8x128xi32>
    %32 = arith.select %26, %30, %31 : vector<8x128xi1>, vector<8x128xi32>
    %cst_9 = arith.constant dense<-2147483648> : vector<8xi32>
    %33 = vector.multi_reduction <maxsi>, %32, %cst_9 [1] : vector<8x128xi32> to vector<8xi32>
    %34 = vector.shape_cast %33 : vector<8xi32> to vector<8x1xi32>
    %c127_i32_10 = arith.constant 127 : i32
    %35 = vector.broadcast %c127_i32_10 : i32 to vector<8x1xi32>
    %36 = arith.subi %35, %34 : vector<8x1xi32>
    %37 = vector.broadcast %11 : vector<1x256xi32> to vector<8x256xi32>
    %38 = vector.broadcast %36 : vector<8x1xi32> to vector<8x256xi32>
    %39 = arith.cmpi eq, %37, %38 : vector<8x256xi32>
    %cst_11 = arith.constant 0.000000e+00 : f32
    %40 = vector.broadcast %cst_11 : f32 to vector<8x256xf32>
    %41 = arith.select %39, %13, %40 : vector<8x256xi1>, vector<8x256xf32>
    %cst_12 = arith.constant dense<0.000000e+00> : vector<8x128xf32>
    %42 = tpu.matmul %41, %1, %cst_12 {dimension_numbers = #tpu.dot_dimension_numbers<[1], [0], [0], [1], [0, 0, 1, 1], [], []>} : vector<8x256xf32>, vector<256x128xf32>, vector<8x128xf32> -> vector<8x128xf32>
    %43 = arith.subf %12, %42 : vector<8x128xf32>
    %c1_i32 = arith.constant 1 : i32
    %cst_13 = arith.constant dense<0.000000e+00> : vector<8x256xf32>
    %44 = tpu.matmul %43, %0, %cst_13 {dimension_numbers = #tpu.dot_dimension_numbers<[1], [0], [0], [1], [0, 0, 1, 1], [], []>} : vector<8x128xf32>, vector<128x256xf32>, vector<8x256xf32> -> vector<8x256xf32>
    %45 = vector.extract_strided_slice %44 {offsets = [0, 0], sizes = [8, 128], strides = [1, 1]} : vector<8x256xf32> to vector<8x128xf32>
    %46 = vector.extract_strided_slice %44 {offsets = [0, 128], sizes = [8, 128], strides = [1, 1]} : vector<8x256xf32> to vector<8x128xf32>
    %47 = arith.mulf %45, %45 : vector<8x128xf32>
    %48 = arith.mulf %46, %46 : vector<8x128xf32>
    %49 = arith.addf %47, %48 : vector<8x128xf32>
    %cst_14 = arith.constant -1.000000e+00 : f32
    %50 = vector.shape_cast %4 : vector<1x128xi1> to vector<1x128xi1>
    %51 = vector.broadcast %50 : vector<1x128xi1> to vector<8x128xi1>
    %52 = vector.broadcast %cst_14 : f32 to vector<8x128xf32>
    %53 = arith.select %51, %49, %52 : vector<8x128xi1>, vector<8x128xf32>
    %cst_15 = arith.constant dense<0xFF800000> : vector<8xf32>
    %54 = vector.multi_reduction <maximumf>, %53, %cst_15 [1] : vector<8x128xf32> to vector<8xf32>
    %55 = vector.shape_cast %54 : vector<8xf32> to vector<8x1xf32>
    %56 = vector.broadcast %55 : vector<8x1xf32> to vector<8x128xf32>
    %57 = arith.cmpf oeq, %53, %56 : vector<8x128xf32>
    %c127_i32_16 = arith.constant 127 : i32
    %58 = vector.broadcast %c127_i32_16 : i32 to vector<1x128xi32>
    %59 = arith.subi %58, %2 : vector<1x128xi32>
    %c-1_i32_17 = arith.constant -1 : i32
    %60 = vector.shape_cast %59 : vector<1x128xi32> to vector<1x128xi32>
    %61 = vector.broadcast %60 : vector<1x128xi32> to vector<8x128xi32>
    %62 = vector.broadcast %c-1_i32_17 : i32 to vector<8x128xi32>
    %63 = arith.select %57, %61, %62 : vector<8x128xi1>, vector<8x128xi32>
    %cst_18 = arith.constant dense<-2147483648> : vector<8xi32>
    %64 = vector.multi_reduction <maxsi>, %63, %cst_18 [1] : vector<8x128xi32> to vector<8xi32>
    %65 = vector.shape_cast %64 : vector<8xi32> to vector<8x1xi32>
    %c127_i32_19 = arith.constant 127 : i32
    %66 = vector.broadcast %c127_i32_19 : i32 to vector<8x1xi32>
    %67 = arith.subi %66, %65 : vector<8x1xi32>
    %68 = vector.broadcast %11 : vector<1x256xi32> to vector<8x256xi32>
    %69 = vector.broadcast %67 : vector<8x1xi32> to vector<8x256xi32>
    %70 = arith.cmpi eq, %68, %69 : vector<8x256xi32>
    %cst_20 = arith.constant 0.000000e+00 : f32
    %71 = vector.broadcast %cst_20 : f32 to vector<8x256xf32>
    %72 = arith.select %70, %44, %71 : vector<8x256xi1>, vector<8x256xf32>
    %cst_21 = arith.constant dense<0.000000e+00> : vector<8x128xf32>
    %73 = tpu.matmul %72, %1, %cst_21 {dimension_numbers = #tpu.dot_dimension_numbers<[1], [0], [0], [1], [0, 0, 1, 1], [], []>} : vector<8x256xf32>, vector<256x128xf32>, vector<8x128xf32> -> vector<8x128xf32>
    %74 = arith.subf %43, %73 : vector<8x128xf32>
    %c2_i32 = arith.constant 2 : i32
    %cst_22 = arith.constant dense<0.000000e+00> : vector<8x256xf32>
    %75 = tpu.matmul %74, %0, %cst_22 {dimension_numbers = #tpu.dot_dimension_numbers<[1], [0], [0], [1], [0, 0, 1, 1], [], []>} : vector<8x128xf32>, vector<128x256xf32>, vector<8x256xf32> -> vector<8x256xf32>
    %76 = vector.extract_strided_slice %75 {offsets = [0, 0], sizes = [8, 128], strides = [1, 1]} : vector<8x256xf32> to vector<8x128xf32>
    %77 = vector.extract_strided_slice %75 {offsets = [0, 128], sizes = [8, 128], strides = [1, 1]} : vector<8x256xf32> to vector<8x128xf32>
    %78 = arith.mulf %76, %76 : vector<8x128xf32>
    %79 = arith.mulf %77, %77 : vector<8x128xf32>
    %80 = arith.addf %78, %79 : vector<8x128xf32>
    %cst_23 = arith.constant -1.000000e+00 : f32
    %81 = vector.shape_cast %4 : vector<1x128xi1> to vector<1x128xi1>
    %82 = vector.broadcast %81 : vector<1x128xi1> to vector<8x128xi1>
    %83 = vector.broadcast %cst_23 : f32 to vector<8x128xf32>
    %84 = arith.select %82, %80, %83 : vector<8x128xi1>, vector<8x128xf32>
    %cst_24 = arith.constant dense<0xFF800000> : vector<8xf32>
    %85 = vector.multi_reduction <maximumf>, %84, %cst_24 [1] : vector<8x128xf32> to vector<8xf32>
    %86 = vector.shape_cast %85 : vector<8xf32> to vector<8x1xf32>
    %87 = vector.broadcast %86 : vector<8x1xf32> to vector<8x128xf32>
    %88 = arith.cmpf oeq, %84, %87 : vector<8x128xf32>
    %c127_i32_25 = arith.constant 127 : i32
    %89 = vector.broadcast %c127_i32_25 : i32 to vector<1x128xi32>
    %90 = arith.subi %89, %2 : vector<1x128xi32>
    %c-1_i32_26 = arith.constant -1 : i32
    %91 = vector.shape_cast %90 : vector<1x128xi32> to vector<1x128xi32>
    %92 = vector.broadcast %91 : vector<1x128xi32> to vector<8x128xi32>
    %93 = vector.broadcast %c-1_i32_26 : i32 to vector<8x128xi32>
    %94 = arith.select %88, %92, %93 : vector<8x128xi1>, vector<8x128xi32>
    %cst_27 = arith.constant dense<-2147483648> : vector<8xi32>
    %95 = vector.multi_reduction <maxsi>, %94, %cst_27 [1] : vector<8x128xi32> to vector<8xi32>
    %96 = vector.shape_cast %95 : vector<8xi32> to vector<8x1xi32>
    %c127_i32_28 = arith.constant 127 : i32
    %97 = vector.broadcast %c127_i32_28 : i32 to vector<8x1xi32>
    %98 = arith.subi %97, %96 : vector<8x1xi32>
    %99 = vector.broadcast %11 : vector<1x256xi32> to vector<8x256xi32>
    %100 = vector.broadcast %98 : vector<8x1xi32> to vector<8x256xi32>
    %101 = arith.cmpi eq, %99, %100 : vector<8x256xi32>
    %cst_29 = arith.constant 0.000000e+00 : f32
    %102 = vector.broadcast %cst_29 : f32 to vector<8x256xf32>
    %103 = arith.select %101, %75, %102 : vector<8x256xi1>, vector<8x256xf32>
    %cst_30 = arith.constant dense<0.000000e+00> : vector<8x128xf32>
    %104 = tpu.matmul %103, %1, %cst_30 {dimension_numbers = #tpu.dot_dimension_numbers<[1], [0], [0], [1], [0, 0, 1, 1], [], []>} : vector<8x256xf32>, vector<256x128xf32>, vector<8x128xf32> -> vector<8x128xf32>
    %105 = arith.subf %74, %104 : vector<8x128xf32>
    %c3_i32 = arith.constant 3 : i32
    %cst_31 = arith.constant dense<0.000000e+00> : vector<8x256xf32>
    %106 = tpu.matmul %105, %0, %cst_31 {dimension_numbers = #tpu.dot_dimension_numbers<[1], [0], [0], [1], [0, 0, 1, 1], [], []>} : vector<8x128xf32>, vector<128x256xf32>, vector<8x256xf32> -> vector<8x256xf32>
    %107 = vector.extract_strided_slice %106 {offsets = [0, 0], sizes = [8, 128], strides = [1, 1]} : vector<8x256xf32> to vector<8x128xf32>
    %108 = vector.extract_strided_slice %106 {offsets = [0, 128], sizes = [8, 128], strides = [1, 1]} : vector<8x256xf32> to vector<8x128xf32>
    %109 = arith.mulf %107, %107 : vector<8x128xf32>
    %110 = arith.mulf %108, %108 : vector<8x128xf32>
    %111 = arith.addf %109, %110 : vector<8x128xf32>
    %cst_32 = arith.constant -1.000000e+00 : f32
    %112 = vector.shape_cast %4 : vector<1x128xi1> to vector<1x128xi1>
    %113 = vector.broadcast %112 : vector<1x128xi1> to vector<8x128xi1>
    %114 = vector.broadcast %cst_32 : f32 to vector<8x128xf32>
    %115 = arith.select %113, %111, %114 : vector<8x128xi1>, vector<8x128xf32>
    %cst_33 = arith.constant dense<0xFF800000> : vector<8xf32>
    %116 = vector.multi_reduction <maximumf>, %115, %cst_33 [1] : vector<8x128xf32> to vector<8xf32>
    %117 = vector.shape_cast %116 : vector<8xf32> to vector<8x1xf32>
    %118 = vector.broadcast %117 : vector<8x1xf32> to vector<8x128xf32>
    %119 = arith.cmpf oeq, %115, %118 : vector<8x128xf32>
    %c127_i32_34 = arith.constant 127 : i32
    %120 = vector.broadcast %c127_i32_34 : i32 to vector<1x128xi32>
    %121 = arith.subi %120, %2 : vector<1x128xi32>
    %c-1_i32_35 = arith.constant -1 : i32
    %122 = vector.shape_cast %121 : vector<1x128xi32> to vector<1x128xi32>
    %123 = vector.broadcast %122 : vector<1x128xi32> to vector<8x128xi32>
    %124 = vector.broadcast %c-1_i32_35 : i32 to vector<8x128xi32>
    %125 = arith.select %119, %123, %124 : vector<8x128xi1>, vector<8x128xi32>
    %cst_36 = arith.constant dense<-2147483648> : vector<8xi32>
    %126 = vector.multi_reduction <maxsi>, %125, %cst_36 [1] : vector<8x128xi32> to vector<8xi32>
    %127 = vector.shape_cast %126 : vector<8xi32> to vector<8x1xi32>
    %c127_i32_37 = arith.constant 127 : i32
    %128 = vector.broadcast %c127_i32_37 : i32 to vector<8x1xi32>
    %129 = arith.subi %128, %127 : vector<8x1xi32>
    %130 = vector.broadcast %11 : vector<1x256xi32> to vector<8x256xi32>
    %131 = vector.broadcast %129 : vector<8x1xi32> to vector<8x256xi32>
    %132 = arith.cmpi eq, %130, %131 : vector<8x256xi32>
    %cst_38 = arith.constant 0.000000e+00 : f32
    %133 = vector.broadcast %cst_38 : f32 to vector<8x256xf32>
    %134 = arith.select %132, %106, %133 : vector<8x256xi1>, vector<8x256xf32>
    %cst_39 = arith.constant dense<0.000000e+00> : vector<8x128xf32>
    %135 = tpu.matmul %134, %1, %cst_39 {dimension_numbers = #tpu.dot_dimension_numbers<[1], [0], [0], [1], [0, 0, 1, 1], [], []>} : vector<8x256xf32>, vector<256x128xf32>, vector<8x128xf32> -> vector<8x128xf32>
    %136 = arith.subf %105, %135 : vector<8x128xf32>
    %c0_40 = arith.constant 0 : index
    %c0_41 = arith.constant 0 : index
    %137 = vector.load %arg4[%c0_40, %c0_41] : memref<8x128xf32, #tpu.memory_space<vmem>>, vector<8x128xf32>
    tpu.vector_store %arg4[%c0_40, %c0_41], %136 {strides = array<i32>} : memref<8x128xf32, #tpu.memory_space<vmem>>, vector<8x128xf32>,
    %c0_42 = arith.constant 0 : index
    %c0_43 = arith.constant 0 : index
    %138 = vector.load %arg1[%c0_42, %c0_43] : memref<8x128xf32, #tpu.memory_space<vmem>>, vector<8x128xf32>
    %139 = arith.subf %138, %136 : vector<8x128xf32>
    %c0_44 = arith.constant 0 : index
    %c0_45 = arith.constant 0 : index
    %140 = vector.load %arg5[%c0_44, %c0_45] : memref<8x128xf32, #tpu.memory_space<vmem>>, vector<8x128xf32>
    tpu.vector_store %arg5[%c0_44, %c0_45], %139 {strides = array<i32>} : memref<8x128xf32, #tpu.memory_space<vmem>>, vector<8x128xf32>,
    return
  }
  func.func @transform_0(%arg0: i32) -> (i32, i32) {
    %c0_i32 = arith.constant 0 : i32
    %c0_i32_0 = arith.constant 0 : i32
    return %arg0, %c0_i32 : i32, i32
  }
  func.func @transform_1(%arg0: i32) -> (i32, i32) {
    %c0_i32 = arith.constant 0 : i32
    %c0_i32_0 = arith.constant 0 : i32
    %c0_i32_1 = arith.constant 0 : i32
    return %c0_i32, %c0_i32_0 : i32, i32
  }
  func.func @transform_2(%arg0: i32) -> (i32, i32) {
    %c0_i32 = arith.constant 0 : i32
    %c0_i32_0 = arith.constant 0 : i32
    %c0_i32_1 = arith.constant 0 : i32
    return %c0_i32, %c0_i32_0 : i32, i32
  }
  func.func @transform_3(%arg0: i32) -> (i32, i32) {
    %c0_i32 = arith.constant 0 : i32
    %c0_i32_0 = arith.constant 0 : i32
    return %arg0, %c0_i32 : i32, i32
  }
  func.func @transform_4(%arg0: i32) -> (i32, i32) {
    %c0_i32 = arith.constant 0 : i32
    %c0_i32_0 = arith.constant 0 : i32
    return %arg0, %c0_i32 : i32, i32
  }
}

</mosaic_0001>

<llo_original>
// kernel: mpnet_forward_pallas.1
$region0: #{mpnet_forward_pallas.1}
  #allocation0 [shape = 'u32[]', space=smem, size = 0x4, offset = 0x4, fixed_abs, tag = 'smem constant byte address 0x4 - core index']
  #allocation1 [shape = 'u32[144,128]{1,0:T(1,128)}', space=vmem, size = 0x12000, scoped, tag = 'internal scratch']
  %s0 = inlined_call_operand.vmem [shape: f32[16,128], index: 0, kind: input, shape index: {}]
  %s1 = inlined_call_operand.vmem [shape: f32[128,256], index: 1, kind: input, shape index: {}]
  %s2 = inlined_call_operand.vmem [shape: f32[256,128], index: 2, kind: input, shape index: {}]
  %s3 = inlined_call_operand.vmem [shape: f32[16,128], index: 3, kind: output, shape index: {0}]
  %s4 = inlined_call_operand.vmem [shape: f32[16,128], index: 4, kind: output, shape index: {1}]
  %5 = xla_tuple %s3, %s4
  %s6 = sld [smem:[#allocation0]]
  $region53: #{mpnet_forward_pallas.1} parent=0
    _
  %s8 = ssub.s32 1, %s6
  %s9 = scalar_select 0, %s8, %s6
  loop: start=0, step=1, limit=4
  $region2: #{mpnet_forward_pallas.1} parent=0 // loop_pre_header
    _
  $region3: #{mpnet_forward_pallas.1} parent=0 // loop_header
    %s11 = sphi 0, %s15
    %p12 = scmp.ge.s32.totalorder %s11, 4
    %s21 = sphi 0, %s23
    %s24 = sphi 0, %s21
    %s25 = sphi 0, %s24
    %s41 = sphi 0, %s25
    %s45 = sphi 0, %s45
    %s47 = sphi 0, %s45
    %s48 = sphi 0, %s47
    %s62 = sphi 0, %s48
    %s66 = sphi 0, %s66
    %s68 = sphi 0, %s66
    %s69 = sphi 0, %s68
    %s83 = sphi 0, %s69
    %s89 = sphi 0, %s91
    %s92 = sphi 0, %s89
    %s93 = sphi 0, %s92
    %s109 = sphi 0, %s93
    %s115 = sphi 0, %s117
    %s118 = sphi 0, %s115
    %s119 = sphi 0, %s118
    %s135 = sphi 0, %s119
  $region4: #{mpnet_forward_pallas.1} parent=0 // loop_header_branch
    %14 = sbr.rel (%p12) target = $region8
  $region5: #{mpnet_forward_pallas.1} parent=0 // loop_body
    %s16 = ssub.s32 %s11, 1
    %s17 = ssub.s32 %s11, 2
    %s18 = sadd.s32 %s11, 1
    %s19 = ssub.s32 %s11, %s18
    %p20 = scmp.eq.s32.totalorder %s19, 0
    %s22 = sadd.s32 %s21, 1
    %s23 = scalar_select %p20, %s21, %s22
    %p26 = pneg %p20
    %p27 = scmp.eq.s32.totalorder %s11, 1
    %p28 = por %p26, %p27
    %p29 = scmp.ne.s32.totalorder %s21, %s24
    %p30 = scmp.eq.s32.totalorder %s11, 0
    %p31 = por %p29, %p30
    %p32 = scmp.ne.s32.totalorder %s21, %s24
    %p33 = scmp.eq.s32.totalorder %s16, 1
    %p34 = por %p32, %p33
    %p35 = scmp.ne.s32.totalorder %s24, %s25
    %p36 = scmp.eq.s32.totalorder %s16, 0
    %p37 = por %p35, %p36
    %p38 = scmp.ne.s32.totalorder %s24, %s25
    %p39 = scmp.eq.s32.totalorder %s17, 1
    %p40 = por %p38, %p39
    %p42 = scmp.ne.s32.totalorder %s25, %s41
    %p43 = scmp.eq.s32.totalorder %s17, 0
    %p44 = por %p42, %p43
    %s46 = sadd.s32 %s45, 1
    %p49 = scmp.eq.s32.totalorder %s11, 1
    %p50 = scmp.ne.s32.totalorder %s45, %s47
    %p51 = scmp.eq.s32.totalorder %s11, 0
    %p52 = por %p50, %p51
    %p53 = scmp.ne.s32.totalorder %s45, %s47
    %p54 = scmp.eq.s32.totalorder %s16, 1
    %p55 = por %p53, %p54
    %p56 = scmp.ne.s32.totalorder %s47, %s48
    %p57 = scmp.eq.s32.totalorder %s16, 0
    %p58 = por %p56, %p57
    %p59 = scmp.ne.s32.totalorder %s47, %s48
    %p60 = scmp.eq.s32.totalorder %s17, 1
    %p61 = por %p59, %p60
    %p63 = scmp.ne.s32.totalorder %s48, %s62
    %p64 = scmp.eq.s32.totalorder %s17, 0
    %p65 = por %p63, %p64
    %s67 = sadd.s32 %s66, 1
    %p70 = scmp.eq.s32.totalorder %s11, 1
    %p71 = scmp.ne.s32.totalorder %s66, %s68
    %p72 = scmp.eq.s32.totalorder %s11, 0
    %p73 = por %p71, %p72
    %p74 = scmp.ne.s32.totalorder %s66, %s68
    %p75 = scmp.eq.s32.totalorder %s16, 1
    %p76 = por %p74, %p75
    %p77 = scmp.ne.s32.totalorder %s68, %s69
    %p78 = scmp.eq.s32.totalorder %s16, 0
    %p79 = por %p77, %p78
    %p80 = scmp.ne.s32.totalorder %s68, %s69
    %p81 = scmp.eq.s32.totalorder %s17, 1
    %p82 = por %p80, %p81
    %p84 = scmp.ne.s32.totalorder %s69, %s83
    %p85 = scmp.eq.s32.totalorder %s17, 0
    %p86 = por %p84, %p85
    %s87 = ssub.s32 %s11, %s18
    %p88 = scmp.eq.s32.totalorder %s87, 0
    %s90 = sadd.s32 %s89, 1
    %s91 = scalar_select %p88, %s89, %s90
    %p94 = pneg %p88
    %p95 = scmp.eq.s32.totalorder %s11, 1
    %p96 = por %p94, %p95
    %p97 = scmp.ne.s32.totalorder %s89, %s92
    %p98 = scmp.eq.s32.totalorder %s11, 0
    %p99 = por %p97, %p98
    %p100 = scmp.ne.s32.totalorder %s89, %s92
    %p101 = scmp.eq.s32.totalorder %s16, 1
    %p102 = por %p100, %p101
    %p103 = scmp.ne.s32.totalorder %s92, %s93
    %p104 = scmp.eq.s32.totalorder %s16, 0
    %p105 = por %p103, %p104
    %p106 = scmp.ne.s32.totalorder %s92, %s93
    %p107 = scmp.eq.s32.totalorder %s17, 1
    %p108 = por %p106, %p107
    %p110 = scmp.ne.s32.totalorder %s93, %s109
    %p111 = scmp.eq.s32.totalorder %s17, 0
    %p112 = por %p110, %p111
    %s113 = ssub.s32 %s11, %s18
    %p114 = scmp.eq.s32.totalorder %s113, 0
    %s116 = sadd.s32 %s115, 1
    %s117 = scalar_select %p114, %s115, %s116
    %p120 = pneg %p114
    %p121 = scmp.eq.s32.totalorder %s11, 1
    %p122 = por %p120, %p121
    %p123 = scmp.ne.s32.totalorder %s115, %s118
    %p124 = scmp.eq.s32.totalorder %s11, 0
    %p125 = por %p123, %p124
    %p126 = scmp.ne.s32.totalorder %s115, %s118
    %p127 = scmp.eq.s32.totalorder %s16, 1
    %p128 = por %p126, %p127
    %p129 = scmp.ne.s32.totalorder %s118, %s119
    %p130 = scmp.eq.s32.totalorder %s16, 0
    %p131 = por %p129, %p130
    %p132 = scmp.ne.s32.totalorder %s118, %s119
    %p133 = scmp.eq.s32.totalorder %s17, 1
    %p134 = por %p132, %p133
    %p136 = scmp.ne.s32.totalorder %s119, %s135
    %p137 = scmp.eq.s32.totalorder %s17, 0
    %p138 = por %p136, %p137
    %p139 = scmp.le.s32.totalorder 1, %s11
    %p140 = scmp.lt.s32.totalorder %s11, 3
    %p141 = pnand %p139, %p140
    %p142 = pneg %p141
    // Predicated region
    $region9: #{mpnet_forward_pallas.1} parent=5 // pred_check
      _
    $region10: #{mpnet_forward_pallas.1} parent=5 // pred_check_branch
      %144 = sbr.rel (%p141) target = $region12
    $region11: #{mpnet_forward_pallas.1} parent=5 // pred_region
      %s145 = ssub.s32 %s11, 1
      // Predicated region
      $region13: #{mpnet_forward_pallas.1} parent=11 // pred_check
        %p146 = pneg %p58
      $region14: #{mpnet_forward_pallas.1} parent=11 // pred_check_branch
        %148 = sbr.rel (%p146) target = $region16
      $region15: #{mpnet_forward_pallas.1} parent=11 // pred_region
        _
      $region16: #{mpnet_forward_pallas.1} parent=11 // pred_fallthru
        _
      // Predicated region
      $region17: #{mpnet_forward_pallas.1} parent=11 // pred_check
        %p149 = pneg %p79
      $region18: #{mpnet_forward_pallas.1} parent=11 // pred_check_branch
        %151 = sbr.rel (%p149) target = $region20
      $region19: #{mpnet_forward_pallas.1} parent=11 // pred_region
        _
      $region20: #{mpnet_forward_pallas.1} parent=11 // pred_fallthru
        _
    $region12: #{mpnet_forward_pallas.1} parent=5 // pred_fallthru
      _
    %p152 = scmp.lt.s32.totalorder %s11, 2
    // Predicated region
    $region21: #{mpnet_forward_pallas.1} parent=5 // pred_check
      %p153 = pneg %p152
    $region22: #{mpnet_forward_pallas.1} parent=5 // pred_check_branch
      %155 = sbr.rel (%p153) target = $region24
    $region23: #{mpnet_forward_pallas.1} parent=5 // pred_region
      // Predicated region
      $region25: #{mpnet_forward_pallas.1} parent=23 // pred_check
        %p156 = pneg %p31
      $region26: #{mpnet_forward_pallas.1} parent=23 // pred_check_branch
        %158 = sbr.rel (%p156) target = $region28
      $region27: #{mpnet_forward_pallas.1} parent=23 // pred_region
        %p159 = scmp.lt.s32.totalorder %s11, 1
        %s160 = scalar_select %p159, %s11, 1
        %s161 = smul.addr %s160, 8
        %s162 = scalar_lea.vmem %s0, %s161
      $region28: #{mpnet_forward_pallas.1} parent=23 // pred_fallthru
        _
    $region24: #{mpnet_forward_pallas.1} parent=5 // pred_fallthru
      _
    %p163 = scmp.le.s32.totalorder 1, %s11
    %p164 = scmp.lt.s32.totalorder %s11, 3
    %p165 = pnand %p163, %p164
    %p166 = pneg %p165
    // Predicated region
    $region29: #{mpnet_forward_pallas.1} parent=5 // pred_check
      _
    $region30: #{mpnet_forward_pallas.1} parent=5 // pred_check_branch
      %168 = sbr.rel (%p165) target = $region32
    $region31: #{mpnet_forward_pallas.1} parent=5 // pred_region
      %s169 = ssub.s32 %s11, 1
      %p170 = scmp.lt.s32.totalorder %s16, 1
      %s171 = scalar_select %p170, %s16, 1
      %s172 = smul.addr %s171, 8
      %s173 = scalar_lea.vmem %s0, %s172
      %p174 = pneg %p37
      %p175 = pneg %p34
      %p176 = pneg %p58
      %p177 = pneg %p55
      %p178 = pneg %p79
      %p179 = pneg %p76
      %p180 = pneg %p105
      %p181 = pneg %p102
      %p182 = scmp.lt.s32.totalorder %s16, 1
      %s183 = scalar_select %p182, %s16, 1
      %s184 = smul.addr %s183, 8
      %s185 = scalar_lea.vmem %s3, %s184
      %p186 = pneg %p131
      %p187 = pneg %p128
      %p188 = scmp.lt.s32.totalorder %s16, 1
      %s189 = scalar_select %p188, %s16, 1
      %s190 = smul.addr %s189, 8
      %s191 = scalar_lea.vmem %s4, %s190
      %p192 = scmp.lt.s32.totalorder %s16, 1
      %s193 = scalar_select %p192, %s16, 1
      %s194 = smul.addr %s193, 8
      %s195 = scalar_lea.vmem %s0, %s194
      %p196 = scmp.lt.s32.totalorder %s16, 1
      %s197 = scalar_select %p196, %s16, 1
      %s198 = smul.addr %s197, 8
      %s199 = scalar_lea.vmem %s3, %s198
      %p200 = scmp.lt.s32.totalorder %s16, 1
      %s201 = scalar_select %p200, %s16, 1
      %s202 = smul.addr %s201, 8
      %s203 = scalar_lea.vmem %s4, %s202
      %v204 = vld [vmem:[%s1] sm:$0xff]
      %v205 = vld [vmem:[%s1 + $0x8] sm:$0xff]
      %v206 = vld [vmem:[%s1 + $0x10] sm:$0xff]
      %v207 = vld [vmem:[%s1 + $0x18] sm:$0xff]
      %v208 = vld [vmem:[%s1 + $0x20] sm:$0xff]
      %v209 = vld [vmem:[%s1 + $0x28] sm:$0xff]
      %v210 = vld [vmem:[%s1 + $0x30] sm:$0xff]
      %v211 = vld [vmem:[%s1 + $0x38] sm:$0xff]
      %v212 = vld [vmem:[%s1 + $0x40] sm:$0xff]
      %v213 = vld [vmem:[%s1 + $0x48] sm:$0xff]
      %v214 = vld [vmem:[%s1 + $0x50] sm:$0xff]
      %v215 = vld [vmem:[%s1 + $0x58] sm:$0xff]
      %v216 = vld [vmem:[%s1 + $0x60] sm:$0xff]
      %v217 = vld [vmem:[%s1 + $0x68] sm:$0xff]
      %v218 = vld [vmem:[%s1 + $0x70] sm:$0xff]
      %v219 = vld [vmem:[%s1 + $0x78] sm:$0xff]
      %v220 = vld [vmem:[%s1 + $0x80] sm:$0xff]
      %v221 = vld [vmem:[%s1 + $0x88] sm:$0xff]
      %v222 = vld [vmem:[%s1 + $0x90] sm:$0xff]
      %v223 = vld [vmem:[%s1 + $0x98] sm:$0xff]
      %v224 = vld [vmem:[%s1 + $0xa0] sm:$0xff]
      %v225 = vld [vmem:[%s1 + $0xa8] sm:$0xff]
      %v226 = vld [vmem:[%s1 + $0xb0] sm:$0xff]
      %v227 = vld [vmem:[%s1 + $0xb8] sm:$0xff]
      %v228 = vld [vmem:[%s1 + $0xc0] sm:$0xff]
      %v229 = vld [vmem:[%s1 + $0xc8] sm:$0xff]
      %v230 = vld [vmem:[%s1 + $0xd0] sm:$0xff]
      %v231 = vld [vmem:[%s1 + $0xd8] sm:$0xff]
      %v232 = vld [vmem:[%s1 + $0xe0] sm:$0xff]
      %v233 = vld [vmem:[%s1 + $0xe8] sm:$0xff]
      %v234 = vld [vmem:[%s1 + $0xf0] sm:$0xff]
      %v235 = vld [vmem:[%s1 + $0xf8] sm:$0xff]
      %v236 = vld [vmem:[%s2] sm:$0xff]
      %v237 = vld [vmem:[%s2 + $0x8] sm:$0xff]
      %v238 = vld [vmem:[%s2 + $0x10] sm:$0xff]
      %v239 = vld [vmem:[%s2 + $0x18] sm:$0xff]
      %v240 = vld [vmem:[%s2 + $0x20] sm:$0xff]
      %v241 = vld [vmem:[%s2 + $0x28] sm:$0xff]
      %v242 = vld [vmem:[%s2 + $0x30] sm:$0xff]
      %v243 = vld [vmem:[%s2 + $0x38] sm:$0xff]
      %v244 = vld [vmem:[%s2 + $0x40] sm:$0xff]
      %v245 = vld [vmem:[%s2 + $0x48] sm:$0xff]
      %v246 = vld [vmem:[%s2 + $0x50] sm:$0xff]
      %v247 = vld [vmem:[%s2 + $0x58] sm:$0xff]
      %v248 = vld [vmem:[%s2 + $0x60] sm:$0xff]
      %v249 = vld [vmem:[%s2 + $0x68] sm:$0xff]
      %v250 = vld [vmem:[%s2 + $0x70] sm:$0xff]
      %v251 = vld [vmem:[%s2 + $0x78] sm:$0xff]
      %v252 = vld [vmem:[%s2 + $0x80] sm:$0xff]
      %v253 = vld [vmem:[%s2 + $0x88] sm:$0xff]
      %v254 = vld [vmem:[%s2 + $0x90] sm:$0xff]
      %v255 = vld [vmem:[%s2 + $0x98] sm:$0xff]
      %v256 = vld [vmem:[%s2 + $0xa0] sm:$0xff]
      %v257 = vld [vmem:[%s2 + $0xa8] sm:$0xff]
      %v258 = vld [vmem:[%s2 + $0xb0] sm:$0xff]
      %v259 = vld [vmem:[%s2 + $0xb8] sm:$0xff]
      %v260 = vld [vmem:[%s2 + $0xc0] sm:$0xff]
      %v261 = vld [vmem:[%s2 + $0xc8] sm:$0xff]
      %v262 = vld [vmem:[%s2 + $0xd0] sm:$0xff]
      %v263 = vld [vmem:[%s2 + $0xd8] sm:$0xff]
      %v264 = vld [vmem:[%s2 + $0xe0] sm:$0xff]
      %v265 = vld [vmem:[%s2 + $0xe8] sm:$0xff]
      %v266 = vld [vmem:[%s2 + $0xf0] sm:$0xff]
      %v267 = vld [vmem:[%s2 + $0xf8] sm:$0xff]
      %v268 = vlaneseq
      %v269 = vand.u32 %v268, 127
      %vm270 = vcmp.lt.s32.totalorder %v269, 64
      %v271 = vadd.s32 %v269, 128
      %vm272 = vcmp.ge.s32.totalorder %v269, 128
      %vm273 = vcmp.ge.s32.totalorder %v271, 128
      %v274 = vsel %vm272, 128, 0
      %v275 = vsel %vm273, 128, 0
      %v276 = vsub.s32 %v269, %v274
      %v277 = vsub.s32 %v271, %v275
      %v278 = vld [vmem:[%s195] sm:$0xff]
      %279 = vmatprep.subr.mxu0 %v235
      %280 = vmatpush1.msra.mxu0 %v234
      %281 = vmatprep.subr.mxu0 %v233
      %282 = vmatpush1.msra.mxu0 %v232
      %283 = vmatprep.subr.mxu0 %v231
      %284 = vmatpush1.msra.mxu0 %v230
      %285 = vmatprep.subr.mxu0 %v229
      %286 = vmatpush1.msra.mxu0 %v228
      %287 = vmatprep.subr.mxu0 %v227
      %288 = vmatpush1.msra.mxu0 %v226
      %289 = vmatprep.subr.mxu0 %v225
      %290 = vmatpush1.msra.mxu0 %v224
      %291 = vmatprep.subr.mxu0 %v223
      %292 = vmatpush1.msra.mxu0 %v222
      %293 = vmatprep.subr.mxu0 %v221
      %294 = vmatpush1.msra.mxu0 %v220
      %295 = vmatprep.subr.mxu0 %v219
      %296 = vmatpush1.msra.mxu0 %v218
      %297 = vmatprep.subr.mxu0 %v217
      %298 = vmatpush1.msra.mxu0 %v216
      %299 = vmatprep.subr.mxu0 %v215
      %300 = vmatpush1.msra.mxu0 %v214
      %301 = vmatprep.subr.mxu0 %v213
      %302 = vmatpush1.msra.mxu0 %v212
      %303 = vmatprep.subr.mxu0 %v211
      %304 = vmatpush1.msra.mxu0 %v210
      %305 = vmatprep.subr.mxu0 %v209
      %306 = vmatpush1.msra.mxu0 %v208
      %307 = vmatprep.subr.mxu0 %v207
      %308 = vmatpush1.msra.mxu0 %v206
      %309 = vmatprep.subr.mxu0 %v205
      %310 = vmatpush1.msra.mxu0 %v204
      %311 = vmatprep.subr.mxu0 0.0
      %312 = vmatpush2.msra.mxu0 0.0
      %313 = vmatprep.subr.mxu0 0.0
      %314 = vmatpush2.msra.mxu0 0.0
      %315 = vmatprep.subr.mxu0 0.0
      %316 = vmatpush2.msra.mxu0 0.0
      %317 = vmatprep.subr.mxu0 0.0
      %318 = vmatpush2.msra.mxu0 0.0
      %319 = vmatprep.subr.mxu0 0.0
      %320 = vmatpush2.msra.mxu0 0.0
      %321 = vmatprep.subr.mxu0 0.0
      %322 = vmatpush2.msra.mxu0 0.0
      %323 = vmatprep.subr.mxu0 0.0
      %324 = vmatpush2.msra.mxu0 0.0
      %325 = vmatprep.subr.mxu0 0.0
      %326 = vmatpush2.msra.mxu0 0.0
      %327 = vmatprep.subr.mxu0 0.0
      %328 = vmatpush2.msra.mxu0 0.0
      %329 = vmatprep.subr.mxu0 0.0
      %330 = vmatpush2.msra.mxu0 0.0
      %331 = vmatprep.subr.mxu0 0.0
      %332 = vmatpush2.msra.mxu0 0.0
      %333 = vmatprep.subr.mxu0 0.0
      %334 = vmatpush2.msra.mxu0 0.0
      %335 = vmatprep.subr.mxu0 0.0
      %336 = vmatpush2.msra.mxu0 0.0
      %337 = vmatprep.subr.mxu0 0.0
      %338 = vmatpush2.msra.mxu0 0.0
      %339 = vmatprep.subr.mxu0 0.0
      %340 = vmatpush2.msra.mxu0 0.0
      %341 = vmatprep.subr.mxu0 0.0
      %342 = vmatpush2.msra.mxu0 0.0
      %343 = vmatprep.mubr.f32.mxu0 0.0
      %344 = vmatmul.mubr.f32.gmra.mxu0 %v278
      %v345 = vpop.f32.mrf.mxu0
      %v346 = vadd.f32 0.0, %v345
      %v347 = vpop.f32.mrf.mxu0
      %v348 = vadd.f32 0.0, %v347
      %349 = vdwg.mxu0
      %v350 = vmul.f32 %v346, %v346
      %v351 = vmul.f32 %v348, %v348
      %v352 = vadd.f32 %v350, %v351
      %v353 = vsel %vm270, 1, 0
      %vm354 = vcmp.eq.s32.totalorder %v353, 1
      %v355 = vsel %vm354, %v352, -1.0
      %356 = vmax.xlane.f32.xlu0 %v355
      %v357 = vpop.xlane.xlu0 %356
      %vm358 = vcmp.eq.f32.partialorder %v355, %v357
      %v359 = vsub.s32 127, %v269
      %v360 = vsel %vm358, %v359, 4294967295
      %v361 = vand.u32 %v360, 65535
      %v362 = vshra.s32 %v360, 16
      %v363 = vcvt.s32.f32 %v361
      %v364 = vcvt.s32.f32 %v362
      %365 = vmax.xlane.f32.xlu0 %v364
      %v366 = vpop.xlane.xlu0 %365
      %vm367 = vcmp.eq.f32.partialorder %v364, %v366
      %v368 = vsel %vm367, %v363, -inf
      %369 = vmax.xlane.f32.xlu0 %v368
      %v370 = vpop.xlane.xlu0 %369
      %v371 = vcvt.f32.s32 %v370
      %v372 = vcvt.f32.s32 %v366
      %v373 = vshll.u32 %v372, 16
      %v374 = vadd.s32 %v373, %v371
      %v375 = vsub.s32 127, %v374
      %vm376 = vcmp.eq.s32.totalorder %v276, %v375
      %vm377 = vcmp.eq.s32.totalorder %v277, %v375
      %v378 = vsel %vm376, %v346, 0.0
      %v379 = vsel %vm377, %v348, 0.0
      %380 = vmatprep.subr.mxu0 0.0
      %381 = vmatpush1.msra.mxu0 %v251
      %382 = vmatprep.subr.mxu0 0.0
      %383 = vmatpush1.msra.mxu0 %v250
      %384 = vmatprep.subr.mxu0 0.0
      %385 = vmatpush1.msra.mxu0 %v249
      %386 = vmatprep.subr.mxu0 0.0
      %387 = vmatpush1.msra.mxu0 %v248
      %388 = vmatprep.subr.mxu0 0.0
      %389 = vmatpush1.msra.mxu0 %v247
      %390 = vmatprep.subr.mxu0 0.0
      %391 = vmatpush1.msra.mxu0 %v246
      %392 = vmatprep.subr.mxu0 0.0
      %393 = vmatpush1.msra.mxu0 %v245
      %394 = vmatprep.subr.mxu0 0.0
      %395 = vmatpush1.msra.mxu0 %v244
      %396 = vmatprep.subr.mxu0 0.0
      %397 = vmatpush1.msra.mxu0 %v243
      %398 = vmatprep.subr.mxu0 0.0
      %399 = vmatpush1.msra.mxu0 %v242
      %400 = vmatprep.subr.mxu0 0.0
      %401 = vmatpush1.msra.mxu0 %v241
      %402 = vmatprep.subr.mxu0 0.0
      %403 = vmatpush1.msra.mxu0 %v240
      %404 = vmatprep.subr.mxu0 0.0
      %405 = vmatpush1.msra.mxu0 %v239
      %406 = vmatprep.subr.mxu0 0.0
      %407 = vmatpush1.msra.mxu0 %v238
      %408 = vmatprep.subr.mxu0 0.0
      %409 = vmatpush1.msra.mxu0 %v237
      %410 = vmatprep.subr.mxu0 0.0
      %411 = vmatpush1.msra.mxu0 %v236
      %412 = vmatprep.subr.mxu0 0.0
      %413 = vmatpush2.msra.mxu0 %v267
      %414 = vmatprep.subr.mxu0 0.0
      %415 = vmatpush2.msra.mxu0 %v266
      %416 = vmatprep.subr.mxu0 0.0
      %417 = vmatpush2.msra.mxu0 %v265
      %418 = vmatprep.subr.mxu0 0.0
      %419 = vmatpush2.msra.mxu0 %v264
      %420 = vmatprep.subr.mxu0 0.0
      %421 = vmatpush2.msra.mxu0 %v263
      %422 = vmatprep.subr.mxu0 0.0
      %423 = vmatpush2.msra.mxu0 %v262
      %424 = vmatprep.subr.mxu0 0.0
      %425 = vmatpush2.msra.mxu0 %v261
      %426 = vmatprep.subr.mxu0 0.0
      %427 = vmatpush2.msra.mxu0 %v260
      %428 = vmatprep.subr.mxu0 0.0
      %429 = vmatpush2.msra.mxu0 %v259
      %430 = vmatprep.subr.mxu0 0.0
      %431 = vmatpush2.msra.mxu0 %v258
      %432 = vmatprep.subr.mxu0 0.0
      %433 = vmatpush2.msra.mxu0 %v257
      %434 = vmatprep.subr.mxu0 0.0
      %435 = vmatpush2.msra.mxu0 %v256
      %436 = vmatprep.subr.mxu0 0.0
      %437 = vmatpush2.msra.mxu0 %v255
      %438 = vmatprep.subr.mxu0 0.0
      %439 = vmatpush2.msra.mxu0 %v254
      %440 = vmatprep.subr.mxu0 0.0
      %441 = vmatpush2.msra.mxu0 %v253
      %442 = vmatprep.subr.mxu0 0.0
      %443 = vmatpush2.msra.mxu0 %v252
      %444 = vmatprep.mubr.f32.mxu0 %v379
      %445 = vmatmul.mubr.f32.gmra.mxu0 %v378
      %v446 = vpop.f32.mrf.mxu0
      %v447 = vadd.f32 0.0, %v446
      %v448 = vpop.f32.mrf.mxu0
      %449 = vdwg.mxu0
      %v450 = vsub.f32 %v278, %v447
      %451 = vmatprep.subr.mxu0 %v235
      %452 = vmatpush1.msra.mxu0 %v234
      %453 = vmatprep.subr.mxu0 %v233
      %454 = vmatpush1.msra.mxu0 %v232
      %455 = vmatprep.subr.mxu0 %v231
      %456 = vmatpush1.msra.mxu0 %v230
      %457 = vmatprep.subr.mxu0 %v229
      %458 = vmatpush1.msra.mxu0 %v228
      %459 = vmatprep.subr.mxu0 %v227
      %460 = vmatpush1.msra.mxu0 %v226
      %461 = vmatprep.subr.mxu0 %v225
      %462 = vmatpush1.msra.mxu0 %v224
      %463 = vmatprep.subr.mxu0 %v223
      %464 = vmatpush1.msra.mxu0 %v222
      %465 = vmatprep.subr.mxu0 %v221
      %466 = vmatpush1.msra.mxu0 %v220
      %467 = vmatprep.subr.mxu0 %v219
      %468 = vmatpush1.msra.mxu0 %v218
      %469 = vmatprep.subr.mxu0 %v217
      %470 = vmatpush1.msra.mxu0 %v216
      %471 = vmatprep.subr.mxu0 %v215
      %472 = vmatpush1.msra.mxu0 %v214
      %473 = vmatprep.subr.mxu0 %v213
      %474 = vmatpush1.msra.mxu0 %v212
      %475 = vmatprep.subr.mxu0 %v211
      %476 = vmatpush1.msra.mxu0 %v210
      %477 = vmatprep.subr.mxu0 %v209
      %478 = vmatpush1.msra.mxu0 %v208
      %479 = vmatprep.subr.mxu0 %v207
      %480 = vmatpush1.msra.mxu0 %v206
      %481 = vmatprep.subr.mxu0 %v205
      %482 = vmatpush1.msra.mxu0 %v204
      %483 = vmatprep.subr.mxu0 0.0
      %484 = vmatpush2.msra.mxu0 0.0
      %485 = vmatprep.subr.mxu0 0.0
      %486 = vmatpush2.msra.mxu0 0.0
      %487 = vmatprep.subr.mxu0 0.0
      %488 = vmatpush2.msra.mxu0 0.0
      %489 = vmatprep.subr.mxu0 0.0
      %490 = vmatpush2.msra.mxu0 0.0
      %491 = vmatprep.subr.mxu0 0.0
      %492 = vmatpush2.msra.mxu0 0.0
      %493 = vmatprep.subr.mxu0 0.0
      %494 = vmatpush2.msra.mxu0 0.0
      %495 = vmatprep.subr.mxu0 0.0
      %496 = vmatpush2.msra.mxu0 0.0
      %497 = vmatprep.subr.mxu0 0.0
      %498 = vmatpush2.msra.mxu0 0.0
      %499 = vmatprep.subr.mxu0 0.0
      %500 = vmatpush2.msra.mxu0 0.0
      %501 = vmatprep.subr.mxu0 0.0
      %502 = vmatpush2.msra.mxu0 0.0
      %503 = vmatprep.subr.mxu0 0.0
      %504 = vmatpush2.msra.mxu0 0.0
      %505 = vmatprep.subr.mxu0 0.0
      %506 = vmatpush2.msra.mxu0 0.0
      %507 = vmatprep.subr.mxu0 0.0
      %508 = vmatpush2.msra.mxu0 0.0
      %509 = vmatprep.subr.mxu0 0.0
      %510 = vmatpush2.msra.mxu0 0.0
      %511 = vmatprep.subr.mxu0 0.0
      %512 = vmatpush2.msra.mxu0 0.0
      %513 = vmatprep.subr.mxu0 0.0
      %514 = vmatpush2.msra.mxu0 0.0
      %515 = vmatprep.mubr.f32.mxu0 0.0
      %516 = vmatmul.mubr.f32.gmra.mxu0 %v450
      %v517 = vpop.f32.mrf.mxu0
      %v518 = vadd.f32 0.0, %v517
      %v519 = vpop.f32.mrf.mxu0
      %v520 = vadd.f32 0.0, %v519
      %521 = vdwg.mxu0
      %v522 = vmul.f32 %v518, %v518
      %v523 = vmul.f32 %v520, %v520
      %v524 = vadd.f32 %v522, %v523
      %v525 = vsel %vm354, %v524, -1.0
      %526 = vmax.xlane.f32.xlu0 %v525
      %v527 = vpop.xlane.xlu0 %526
      %vm528 = vcmp.eq.f32.partialorder %v525, %v527
      %v529 = vsel %vm528, %v359, 4294967295
      %v530 = vand.u32 %v529, 65535
      %v531 = vshra.s32 %v529, 16
      %v532 = vcvt.s32.f32 %v530
      %v533 = vcvt.s32.f32 %v531
      %534 = vmax.xlane.f32.xlu0 %v533
      %v535 = vpop.xlane.xlu0 %534
      %vm536 = vcmp.eq.f32.partialorder %v533, %v535
      %v537 = vsel %vm536, %v532, -inf
      %538 = vmax.xlane.f32.xlu0 %v537
      %v539 = vpop.xlane.xlu0 %538
      %v540 = vcvt.f32.s32 %v539
      %v541 = vcvt.f32.s32 %v535
      %v542 = vshll.u32 %v541, 16
      %v543 = vadd.s32 %v542, %v540
      %v544 = vsub.s32 127, %v543
      %vm545 = vcmp.eq.s32.totalorder %v276, %v544
      %vm546 = vcmp.eq.s32.totalorder %v277, %v544
      %v547 = vsel %vm545, %v518, 0.0
      %v548 = vsel %vm546, %v520, 0.0
      %549 = vmatprep.subr.mxu0 0.0
      %550 = vmatpush1.msra.mxu0 %v251
      %551 = vmatprep.subr.mxu0 0.0
      %552 = vmatpush1.msra.mxu0 %v250
      %553 = vmatprep.subr.mxu0 0.0
      %554 = vmatpush1.msra.mxu0 %v249
      %555 = vmatprep.subr.mxu0 0.0
      %556 = vmatpush1.msra.mxu0 %v248
      %557 = vmatprep.subr.mxu0 0.0
      %558 = vmatpush1.msra.mxu0 %v247
      %559 = vmatprep.subr.mxu0 0.0
      %560 = vmatpush1.msra.mxu0 %v246
      %561 = vmatprep.subr.mxu0 0.0
      %562 = vmatpush1.msra.mxu0 %v245
      %563 = vmatprep.subr.mxu0 0.0
      %564 = vmatpush1.msra.mxu0 %v244
      %565 = vmatprep.subr.mxu0 0.0
      %566 = vmatpush1.msra.mxu0 %v243
      %567 = vmatprep.subr.mxu0 0.0
      %568 = vmatpush1.msra.mxu0 %v242
      %569 = vmatprep.subr.mxu0 0.0
      %570 = vmatpush1.msra.mxu0 %v241
      %571 = vmatprep.subr.mxu0 0.0
      %572 = vmatpush1.msra.mxu0 %v240
      %573 = vmatprep.subr.mxu0 0.0
      %574 = vmatpush1.msra.mxu0 %v239
      %575 = vmatprep.subr.mxu0 0.0
      %576 = vmatpush1.msra.mxu0 %v238
      %577 = vmatprep.subr.mxu0 0.0
      %578 = vmatpush1.msra.mxu0 %v237
      %579 = vmatprep.subr.mxu0 0.0
      %580 = vmatpush1.msra.mxu0 %v236
      %581 = vmatprep.subr.mxu0 0.0
      %582 = vmatpush2.msra.mxu0 %v267
      %583 = vmatprep.subr.mxu0 0.0
      %584 = vmatpush2.msra.mxu0 %v266
      %585 = vmatprep.subr.mxu0 0.0
      %586 = vmatpush2.msra.mxu0 %v265
      %587 = vmatprep.subr.mxu0 0.0
      %588 = vmatpush2.msra.mxu0 %v264
      %589 = vmatprep.subr.mxu0 0.0
      %590 = vmatpush2.msra.mxu0 %v263
      %591 = vmatprep.subr.mxu0 0.0
      %592 = vmatpush2.msra.mxu0 %v262
      %593 = vmatprep.subr.mxu0 0.0
      %594 = vmatpush2.msra.mxu0 %v261
      %595 = vmatprep.subr.mxu0 0.0
      %596 = vmatpush2.msra.mxu0 %v260
      %597 = vmatprep.subr.mxu0 0.0
      %598 = vmatpush2.msra.mxu0 %v259
      %599 = vmatprep.subr.mxu0 0.0
      %600 = vmatpush2.msra.mxu0 %v258
      %601 = vmatprep.subr.mxu0 0.0
      %602 = vmatpush2.msra.mxu0 %v257
      %603 = vmatprep.subr.mxu0 0.0
      %604 = vmatpush2.msra.mxu0 %v256
      %605 = vmatprep.subr.mxu0 0.0
      %606 = vmatpush2.msra.mxu0 %v255
      %607 = vmatprep.subr.mxu0 0.0
      %608 = vmatpush2.msra.mxu0 %v254
      %609 = vmatprep.subr.mxu0 0.0
      %610 = vmatpush2.msra.mxu0 %v253
      %611 = vmatprep.subr.mxu0 0.0
      %612 = vmatpush2.msra.mxu0 %v252
      %613 = vmatprep.mubr.f32.mxu0 %v548
      %614 = vmatmul.mubr.f32.gmra.mxu0 %v547
      %v615 = vpop.f32.mrf.mxu0
      %v616 = vadd.f32 0.0, %v615
      %v617 = vpop.f32.mrf.mxu0
      %618 = vdwg.mxu0
      %v619 = vsub.f32 %v450, %v616
      %620 = vmatprep.subr.mxu0 %v235
      %621 = vmatpush1.msra.mxu0 %v234
      %622 = vmatprep.subr.mxu0 %v233
      %623 = vmatpush1.msra.mxu0 %v232
      %624 = vmatprep.subr.mxu0 %v231
      %625 = vmatpush1.msra.mxu0 %v230
      %626 = vmatprep.subr.mxu0 %v229
      %627 = vmatpush1.msra.mxu0 %v228
      %628 = vmatprep.subr.mxu0 %v227
      %629 = vmatpush1.msra.mxu0 %v226
      %630 = vmatprep.subr.mxu0 %v225
      %631 = vmatpush1.msra.mxu0 %v224
      %632 = vmatprep.subr.mxu0 %v223
      %633 = vmatpush1.msra.mxu0 %v222
      %634 = vmatprep.subr.mxu0 %v221
      %635 = vmatpush1.msra.mxu0 %v220
      %636 = vmatprep.subr.mxu0 %v219
      %637 = vmatpush1.msra.mxu0 %v218
      %638 = vmatprep.subr.mxu0 %v217
      %639 = vmatpush1.msra.mxu0 %v216
      %640 = vmatprep.subr.mxu0 %v215
      %641 = vmatpush1.msra.mxu0 %v214
      %642 = vmatprep.subr.mxu0 %v213
      %643 = vmatpush1.msra.mxu0 %v212
      %644 = vmatprep.subr.mxu0 %v211
      %645 = vmatpush1.msra.mxu0 %v210
      %646 = vmatprep.subr.mxu0 %v209
      %647 = vmatpush1.msra.mxu0 %v208
      %648 = vmatprep.subr.mxu0 %v207
      %649 = vmatpush1.msra.mxu0 %v206
      %650 = vmatprep.subr.mxu0 %v205
      %651 = vmatpush1.msra.mxu0 %v204
      %652 = vmatprep.subr.mxu0 0.0
      %653 = vmatpush2.msra.mxu0 0.0
      %654 = vmatprep.subr.mxu0 0.0
      %655 = vmatpush2.msra.mxu0 0.0
      %656 = vmatprep.subr.mxu0 0.0
      %657 = vmatpush2.msra.mxu0 0.0
      %658 = vmatprep.subr.mxu0 0.0
      %659 = vmatpush2.msra.mxu0 0.0
      %660 = vmatprep.subr.mxu0 0.0
      %661 = vmatpush2.msra.mxu0 0.0
      %662 = vmatprep.subr.mxu0 0.0
      %663 = vmatpush2.msra.mxu0 0.0
      %664 = vmatprep.subr.mxu0 0.0
      %665 = vmatpush2.msra.mxu0 0.0
      %666 = vmatprep.subr.mxu0 0.0
      %667 = vmatpush2.msra.mxu0 0.0
      %668 = vmatprep.subr.mxu0 0.0
      %669 = vmatpush2.msra.mxu0 0.0
      %670 = vmatprep.subr.mxu0 0.0
      %671 = vmatpush2.msra.mxu0 0.0
      %672 = vmatprep.subr.mxu0 0.0
      %673 = vmatpush2.msra.mxu0 0.0
      %674 = vmatprep.subr.mxu0 0.0
      %675 = vmatpush2.msra.mxu0 0.0
      %676 = vmatprep.subr.mxu0 0.0
      %677 = vmatpush2.msra.mxu0 0.0
      %678 = vmatprep.subr.mxu0 0.0
      %679 = vmatpush2.msra.mxu0 0.0
      %680 = vmatprep.subr.mxu0 0.0
      %681 = vmatpush2.msra.mxu0 0.0
      %682 = vmatprep.subr.mxu0 0.0
      %683 = vmatpush2.msra.mxu0 0.0
      %684 = vmatprep.mubr.f32.mxu0 0.0
      %685 = vmatmul.mubr.f32.gmra.mxu0 %v619
      %v686 = vpop.f32.mrf.mxu0
      %v687 = vadd.f32 0.0, %v686
      %v688 = vpop.f32.mrf.mxu0
      %v689 = vadd.f32 0.0, %v688
      %690 = vdwg.mxu0
      %v691 = vmul.f32 %v687, %v687
      %v692 = vmul.f32 %v689, %v689
      %v693 = vadd.f32 %v691, %v692
      %v694 = vsel %vm354, %v693, -1.0
      %695 = vmax.xlane.f32.xlu0 %v694
      %v696 = vpop.xlane.xlu0 %695
      %vm697 = vcmp.eq.f32.partialorder %v694, %v696
      %v698 = vsel %vm697, %v359, 4294967295
      %v699 = vand.u32 %v698, 65535
      %v700 = vshra.s32 %v698, 16
      %v701 = vcvt.s32.f32 %v699
      %v702 = vcvt.s32.f32 %v700
      %703 = vmax.xlane.f32.xlu0 %v702
      %v704 = vpop.xlane.xlu0 %703
      %vm705 = vcmp.eq.f32.partialorder %v702, %v704
      %v706 = vsel %vm705, %v701, -inf
      %707 = vmax.xlane.f32.xlu0 %v706
      %v708 = vpop.xlane.xlu0 %707
      %v709 = vcvt.f32.s32 %v708
      %v710 = vcvt.f32.s32 %v704
      %v711 = vshll.u32 %v710, 16
      %v712 = vadd.s32 %v711, %v709
      %v713 = vsub.s32 127, %v712
      %vm714 = vcmp.eq.s32.totalorder %v276, %v713
      %vm715 = vcmp.eq.s32.totalorder %v277, %v713
      %v716 = vsel %vm714, %v687, 0.0
      %v717 = vsel %vm715, %v689, 0.0
      %718 = vmatprep.subr.mxu0 0.0
      %719 = vmatpush1.msra.mxu0 %v251
      %720 = vmatprep.subr.mxu0 0.0
      %721 = vmatpush1.msra.mxu0 %v250
      %722 = vmatprep.subr.mxu0 0.0
      %723 = vmatpush1.msra.mxu0 %v249
      %724 = vmatprep.subr.mxu0 0.0
      %725 = vmatpush1.msra.mxu0 %v248
      %726 = vmatprep.subr.mxu0 0.0
      %727 = vmatpush1.msra.mxu0 %v247
      %728 = vmatprep.subr.mxu0 0.0
      %729 = vmatpush1.msra.mxu0 %v246
      %730 = vmatprep.subr.mxu0 0.0
      %731 = vmatpush1.msra.mxu0 %v245
      %732 = vmatprep.subr.mxu0 0.0
      %733 = vmatpush1.msra.mxu0 %v244
      %734 = vmatprep.subr.mxu0 0.0
      %735 = vmatpush1.msra.mxu0 %v243
      %736 = vmatprep.subr.mxu0 0.0
      %737 = vmatpush1.msra.mxu0 %v242
      %738 = vmatprep.subr.mxu0 0.0
      %739 = vmatpush1.msra.mxu0 %v241
      %740 = vmatprep.subr.mxu0 0.0
      %741 = vmatpush1.msra.mxu0 %v240
      %742 = vmatprep.subr.mxu0 0.0
      %743 = vmatpush1.msra.mxu0 %v239
      %744 = vmatprep.subr.mxu0 0.0
      %745 = vmatpush1.msra.mxu0 %v238
      %746 = vmatprep.subr.mxu0 0.0
      %747 = vmatpush1.msra.mxu0 %v237
      %748 = vmatprep.subr.mxu0 0.0
      %749 = vmatpush1.msra.mxu0 %v236
      %750 = vmatprep.subr.mxu0 0.0
      %751 = vmatpush2.msra.mxu0 %v267
      %752 = vmatprep.subr.mxu0 0.0
      %753 = vmatpush2.msra.mxu0 %v266
      %754 = vmatprep.subr.mxu0 0.0
      %755 = vmatpush2.msra.mxu0 %v265
      %756 = vmatprep.subr.mxu0 0.0
      %757 = vmatpush2.msra.mxu0 %v264
      %758 = vmatprep.subr.mxu0 0.0
      %759 = vmatpush2.msra.mxu0 %v263
      %760 = vmatprep.subr.mxu0 0.0
      %761 = vmatpush2.msra.mxu0 %v262
      %762 = vmatprep.subr.mxu0 0.0
      %763 = vmatpush2.msra.mxu0 %v261
      %764 = vmatprep.subr.mxu0 0.0
      %765 = vmatpush2.msra.mxu0 %v260
      %766 = vmatprep.subr.mxu0 0.0
      %767 = vmatpush2.msra.mxu0 %v259
      %768 = vmatprep.subr.mxu0 0.0
      %769 = vmatpush2.msra.mxu0 %v258
      %770 = vmatprep.subr.mxu0 0.0
      %771 = vmatpush2.msra.mxu0 %v257
      %772 = vmatprep.subr.mxu0 0.0
      %773 = vmatpush2.msra.mxu0 %v256
      %774 = vmatprep.subr.mxu0 0.0
      %775 = vmatpush2.msra.mxu0 %v255
      %776 = vmatprep.subr.mxu0 0.0
      %777 = vmatpush2.msra.mxu0 %v254
      %778 = vmatprep.subr.mxu0 0.0
      %779 = vmatpush2.msra.mxu0 %v253
      %780 = vmatprep.subr.mxu0 0.0
      %781 = vmatpush2.msra.mxu0 %v252
      %782 = vmatprep.mubr.f32.mxu0 %v717
      %783 = vmatmul.mubr.f32.gmra.mxu0 %v716
      %v784 = vpop.f32.mrf.mxu0
      %v785 = vadd.f32 0.0, %v784
      %v786 = vpop.f32.mrf.mxu0
      %787 = vdwg.mxu0
      %v788 = vsub.f32 %v619, %v785
      %789 = vmatprep.subr.mxu0 %v235
      %790 = vmatpush1.msra.mxu0 %v234
      %791 = vmatprep.subr.mxu0 %v233
      %792 = vmatpush1.msra.mxu0 %v232
      %793 = vmatprep.subr.mxu0 %v231
      %794 = vmatpush1.msra.mxu0 %v230
      %795 = vmatprep.subr.mxu0 %v229
      %796 = vmatpush1.msra.mxu0 %v228
      %797 = vmatprep.subr.mxu0 %v227
      %798 = vmatpush1.msra.mxu0 %v226
      %799 = vmatprep.subr.mxu0 %v225
      %800 = vmatpush1.msra.mxu0 %v224
      %801 = vmatprep.subr.mxu0 %v223
      %802 = vmatpush1.msra.mxu0 %v222
      %803 = vmatprep.subr.mxu0 %v221
      %804 = vmatpush1.msra.mxu0 %v220
      %805 = vmatprep.subr.mxu0 %v219
      %806 = vmatpush1.msra.mxu0 %v218
      %807 = vmatprep.subr.mxu0 %v217
      %808 = vmatpush1.msra.mxu0 %v216
      %809 = vmatprep.subr.mxu0 %v215
      %810 = vmatpush1.msra.mxu0 %v214
      %811 = vmatprep.subr.mxu0 %v213
      %812 = vmatpush1.msra.mxu0 %v212
      %813 = vmatprep.subr.mxu0 %v211
      %814 = vmatpush1.msra.mxu0 %v210
      %815 = vmatprep.subr.mxu0 %v209
      %816 = vmatpush1.msra.mxu0 %v208
      %817 = vmatprep.subr.mxu0 %v207
      %818 = vmatpush1.msra.mxu0 %v206
      %819 = vmatprep.subr.mxu0 %v205
      %820 = vmatpush1.msra.mxu0 %v204
      %821 = vmatprep.subr.mxu0 0.0
      %822 = vmatpush2.msra.mxu0 0.0
      %823 = vmatprep.subr.mxu0 0.0
      %824 = vmatpush2.msra.mxu0 0.0
      %825 = vmatprep.subr.mxu0 0.0
      %826 = vmatpush2.msra.mxu0 0.0
      %827 = vmatprep.subr.mxu0 0.0
      %828 = vmatpush2.msra.mxu0 0.0
      %829 = vmatprep.subr.mxu0 0.0
      %830 = vmatpush2.msra.mxu0 0.0
      %831 = vmatprep.subr.mxu0 0.0
      %832 = vmatpush2.msra.mxu0 0.0
      %833 = vmatprep.subr.mxu0 0.0
      %834 = vmatpush2.msra.mxu0 0.0
      %835 = vmatprep.subr.mxu0 0.0
      %836 = vmatpush2.msra.mxu0 0.0
      %837 = vmatprep.subr.mxu0 0.0
      %838 = vmatpush2.msra.mxu0 0.0
      %839 = vmatprep.subr.mxu0 0.0
      %840 = vmatpush2.msra.mxu0 0.0
      %841 = vmatprep.subr.mxu0 0.0
      %842 = vmatpush2.msra.mxu0 0.0
      %843 = vmatprep.subr.mxu0 0.0
      %844 = vmatpush2.msra.mxu0 0.0
      %845 = vmatprep.subr.mxu0 0.0
      %846 = vmatpush2.msra.mxu0 0.0
      %847 = vmatprep.subr.mxu0 0.0
      %848 = vmatpush2.msra.mxu0 0.0
      %849 = vmatprep.subr.mxu0 0.0
      %850 = vmatpush2.msra.mxu0 0.0
      %851 = vmatprep.subr.mxu0 0.0
      %852 = vmatpush2.msra.mxu0 0.0
      %853 = vmatprep.mubr.f32.mxu0 0.0
      %854 = vmatmul.mubr.f32.gmra.mxu0 %v788
      %v855 = vpop.f32.mrf.mxu0
      %v856 = vadd.f32 0.0, %v855
      %v857 = vpop.f32.mrf.mxu0
      %v858 = vadd.f32 0.0, %v857
      %859 = vdwg.mxu0
      %v860 = vmul.f32 %v856, %v856
      %v861 = vmul.f32 %v858, %v858
      %v862 = vadd.f32 %v860, %v861
      %v863 = vsel %vm354, %v862, -1.0
      %864 = vmax.xlane.f32.xlu0 %v863
      %v865 = vpop.xlane.xlu0 %864
      %vm866 = vcmp.eq.f32.partialorder %v863, %v865
      %v867 = vsel %vm866, %v359, 4294967295
      %v868 = vand.u32 %v867, 65535
      %v869 = vshra.s32 %v867, 16
      %v870 = vcvt.s32.f32 %v868
      %v871 = vcvt.s32.f32 %v869
      %872 = vmax.xlane.f32.xlu0 %v871
      %v873 = vpop.xlane.xlu0 %872
      %vm874 = vcmp.eq.f32.partialorder %v871, %v873
      %v875 = vsel %vm874, %v870, -inf
      %876 = vmax.xlane.f32.xlu0 %v875
      %v877 = vpop.xlane.xlu0 %876
      %v878 = vcvt.f32.s32 %v877
      %v879 = vcvt.f32.s32 %v873
      %v880 = vshll.u32 %v879, 16
      %v881 = vadd.s32 %v880, %v878
      %v882 = vsub.s32 127, %v881
      %vm883 = vcmp.eq.s32.totalorder %v276, %v882
      %vm884 = vcmp.eq.s32.totalorder %v277, %v882
      %v885 = vsel %vm883, %v856, 0.0
      %v886 = vsel %vm884, %v858, 0.0
      %887 = vmatprep.subr.mxu0 0.0
      %888 = vmatpush1.msra.mxu0 %v251
      %889 = vmatprep.subr.mxu0 0.0
      %890 = vmatpush1.msra.mxu0 %v250
      %891 = vmatprep.subr.mxu0 0.0
      %892 = vmatpush1.msra.mxu0 %v249
      %893 = vmatprep.subr.mxu0 0.0
      %894 = vmatpush1.msra.mxu0 %v248
      %895 = vmatprep.subr.mxu0 0.0
      %896 = vmatpush1.msra.mxu0 %v247
      %897 = vmatprep.subr.mxu0 0.0
      %898 = vmatpush1.msra.mxu0 %v246
      %899 = vmatprep.subr.mxu0 0.0
      %900 = vmatpush1.msra.mxu0 %v245
      %901 = vmatprep.subr.mxu0 0.0
      %902 = vmatpush1.msra.mxu0 %v244
      %903 = vmatprep.subr.mxu0 0.0
      %904 = vmatpush1.msra.mxu0 %v243
      %905 = vmatprep.subr.mxu0 0.0
      %906 = vmatpush1.msra.mxu0 %v242
      %907 = vmatprep.subr.mxu0 0.0
      %908 = vmatpush1.msra.mxu0 %v241
      %909 = vmatprep.subr.mxu0 0.0
      %910 = vmatpush1.msra.mxu0 %v240
      %911 = vmatprep.subr.mxu0 0.0
      %912 = vmatpush1.msra.mxu0 %v239
      %913 = vmatprep.subr.mxu0 0.0
      %914 = vmatpush1.msra.mxu0 %v238
      %915 = vmatprep.subr.mxu0 0.0
      %916 = vmatpush1.msra.mxu0 %v237
      %917 = vmatprep.subr.mxu0 0.0
      %918 = vmatpush1.msra.mxu0 %v236
      %919 = vmatprep.subr.mxu0 0.0
      %920 = vmatpush2.msra.mxu0 %v267
      %921 = vmatprep.subr.mxu0 0.0
      %922 = vmatpush2.msra.mxu0 %v266
      %923 = vmatprep.subr.mxu0 0.0
      %924 = vmatpush2.msra.mxu0 %v265
      %925 = vmatprep.subr.mxu0 0.0
      %926 = vmatpush2.msra.mxu0 %v264
      %927 = vmatprep.subr.mxu0 0.0
      %928 = vmatpush2.msra.mxu0 %v263
      %929 = vmatprep.subr.mxu0 0.0
      %930 = vmatpush2.msra.mxu0 %v262
      %931 = vmatprep.subr.mxu0 0.0
      %932 = vmatpush2.msra.mxu0 %v261
      %933 = vmatprep.subr.mxu0 0.0
      %934 = vmatpush2.msra.mxu0 %v260
      %935 = vmatprep.subr.mxu0 0.0
      %936 = vmatpush2.msra.mxu0 %v259
      %937 = vmatprep.subr.mxu0 0.0
      %938 = vmatpush2.msra.mxu0 %v258
      %939 = vmatprep.subr.mxu0 0.0
      %940 = vmatpush2.msra.mxu0 %v257
      %941 = vmatprep.subr.mxu0 0.0
      %942 = vmatpush2.msra.mxu0 %v256
      %943 = vmatprep.subr.mxu0 0.0
      %944 = vmatpush2.msra.mxu0 %v255
      %945 = vmatprep.subr.mxu0 0.0
      %946 = vmatpush2.msra.mxu0 %v254
      %947 = vmatprep.subr.mxu0 0.0
      %948 = vmatpush2.msra.mxu0 %v253
      %949 = vmatprep.subr.mxu0 0.0
      %950 = vmatpush2.msra.mxu0 %v252
      %951 = vmatprep.mubr.f32.mxu0 %v886
      %952 = vmatmul.mubr.f32.gmra.mxu0 %v885
      %v953 = vpop.f32.mrf.mxu0
      %v954 = vadd.f32 0.0, %v953
      %v955 = vpop.f32.mrf.mxu0
      %956 = vdwg.mxu0
      %v957 = vsub.f32 %v788, %v954
      %958 = vst [vmem:[%s199] sm:$0xff] %v957
      %v959 = vld [vmem:[%s195] sm:$0xff]
      %v960 = vsub.f32 %v959, %v957
      %961 = vst [vmem:[%s203] sm:$0xff] %v960
      %p962 = scmp.lt.s32.totalorder %s16, 1
      %s963 = scalar_select %p962, %s16, 1
      %s964 = smul.addr %s963, 8
      %s965 = scalar_lea.vmem %s3, %s964
      %p966 = scmp.lt.s32.totalorder %s16, 1
      %s967 = scalar_select %p966, %s16, 1
      %s968 = smul.addr %s967, 8
      %s969 = scalar_lea.vmem %s4, %s968
      // Predicated region
      $region33: #{mpnet_forward_pallas.1} parent=31 // pred_check
        %p970 = pneg %p102
      $region34: #{mpnet_forward_pallas.1} parent=31 // pred_check_branch
        %972 = sbr.rel (%p970) target = $region36
      $region35: #{mpnet_forward_pallas.1} parent=31 // pred_region
        _
      $region36: #{mpnet_forward_pallas.1} parent=31 // pred_fallthru
        _
      // Predicated region
      $region37: #{mpnet_forward_pallas.1} parent=31 // pred_check
        %p973 = pneg %p128
      $region38: #{mpnet_forward_pallas.1} parent=31 // pred_check_branch
        %975 = sbr.rel (%p973) target = $region40
      $region39: #{mpnet_forward_pallas.1} parent=31 // pred_region
        _
      $region40: #{mpnet_forward_pallas.1} parent=31 // pred_fallthru
        _
    $region32: #{mpnet_forward_pallas.1} parent=5 // pred_fallthru
      _
    %p976 = scmp.le.s32.totalorder 2, %s11
    // Predicated region
    $region41: #{mpnet_forward_pallas.1} parent=5 // pred_check
      %p977 = pneg %p976
    $region42: #{mpnet_forward_pallas.1} parent=5 // pred_check_branch
      %979 = sbr.rel (%p977) target = $region44
    $region43: #{mpnet_forward_pallas.1} parent=5 // pred_region
      %s980 = ssub.s32 %s11, 2
      // Predicated region
      $region45: #{mpnet_forward_pallas.1} parent=43 // pred_check
        %p981 = pneg %p108
      $region46: #{mpnet_forward_pallas.1} parent=43 // pred_check_branch
        %983 = sbr.rel (%p981) target = $region48
      $region47: #{mpnet_forward_pallas.1} parent=43 // pred_region
        %p984 = scmp.lt.s32.totalorder %s17, 1
        %s985 = scalar_select %p984, %s17, 1
        %s986 = smul.addr %s985, 8
        %s987 = scalar_lea.vmem %s3, %s986
      $region48: #{mpnet_forward_pallas.1} parent=43 // pred_fallthru
        _
      // Predicated region
      $region49: #{mpnet_forward_pallas.1} parent=43 // pred_check
        %p988 = pneg %p134
      $region50: #{mpnet_forward_pallas.1} parent=43 // pred_check_branch
        %990 = sbr.rel (%p988) target = $region52
      $region51: #{mpnet_forward_pallas.1} parent=43 // pred_region
        %p991 = scmp.lt.s32.totalorder %s17, 1
        %s992 = scalar_select %p991, %s17, 1
        %s993 = smul.addr %s992, 8
        %s994 = scalar_lea.vmem %s4, %s993
      $region52: #{mpnet_forward_pallas.1} parent=43 // pred_fallthru
        _
    $region44: #{mpnet_forward_pallas.1} parent=5 // pred_fallthru
      _
  $region6: #{mpnet_forward_pallas.1} parent=0 // loop_footer
    %s15 = sadd.s32 1, %s11
  $region7: #{mpnet_forward_pallas.1} parent=0 // loop_footer_branch
    %10 = sbr.rel target = $region3
  $region8: #{mpnet_forward_pallas.1} parent=0 // loop_exit
    _

</llo_original>
